<compile_context>
chip_gen: v7x
topology: tpu7x:2x2x1
jax: 0.10.0
libtpu: 0.0.40
codegen_flags: <defaults>
</compile_context>

<pallas_src>
import functools

import jax
import jax.numpy as jnp
from jax.experimental import pallas as pl
from jax.experimental.pallas import tpu as pltpu


def _ffn_resident_kernel(x_ref, w1t_ref, w2t_ref, o_ref):
    # x_ref: (tm, D), w1t_ref: (D, H), w2t_ref: (H, D), o_ref: (tm, D)
    h = jnp.dot(x_ref[...], w1t_ref[...], preferred_element_type=jnp.float32)
    h = jnp.maximum(h, 0.0)  # ReLU on the f32 accumulator
    y = jnp.dot(h.astype(w2t_ref.dtype), w2t_ref[...],
                preferred_element_type=jnp.float32)
    o_ref[...] = y.astype(o_ref.dtype)


def _ffn_htiled_kernel(x_ref, w1t_ref, w2t_ref, o_ref, acc_ref):
    # Hidden-dim (reduction) tiled: x:(tm,D), w1t:(D,th), w2t:(th,D), acc:(tm,D) f32
    k = pl.program_id(1)

    @pl.when(k == 0)
    def _():
        acc_ref[...] = jnp.zeros_like(acc_ref)

    h = jnp.dot(x_ref[...], w1t_ref[...], preferred_element_type=jnp.float32)
    h = jnp.maximum(h, 0.0)
    acc_ref[...] += jnp.dot(h.astype(w2t_ref.dtype), w2t_ref[...],
                            preferred_element_type=jnp.float32)

    @pl.when(k == pl.num_programs(1) - 1)
    def _():
        o_ref[...] = acc_ref[...].astype(o_ref.dtype)


def _round_up(n: int, m: int) -> int:
    return ((n + m - 1) // m) * m


def _vmem_capacity_bytes() -> int:
    try:
        return int(pltpu.get_tpu_info().vmem_capacity_bytes)
    except Exception:
        return 64 << 20  # conservative per-TC value (v7x); correct everywhere


@functools.partial(jax.jit, static_argnames=("tm",))
def poswise_ffn_2(x, w1t, w2t, *, tm=None):
    """Fused Linear(D->D/4) -> ReLU -> Linear(D/4->D), both bias-free.

    x:   (..., D)
    w1t: (D, H)  pre-transposed first Linear weight (H = D // 4)
    w2t: (H, D)  pre-transposed second Linear weight
    Returns an array of the same shape/dtype as x.
    """
    D = x.shape[-1]
    H = w1t.shape[1]
    orig_shape = x.shape
    x2d = x.reshape(-1, D)
    M = x2d.shape[0]
    if M == 0:  # empty leading dims
        return jnp.zeros(orig_shape, x.dtype)

    xb = jnp.dtype(x.dtype).itemsize
    wb = jnp.dtype(w1t.dtype).itemsize
    pack = max(8, 32 // xb)  # sublane packing: 8 rows f32, 16 bf16, 32 int8/fp8

    # Per-TensorCore VMEM budget (v7x: 64 MiB/TC, v5e/v6e: 128 MiB).
    vmem_cap = _vmem_capacity_bytes()
    budget = vmem_cap - (8 << 20)  # headroom for compiler scratch

    # Row tile: large enough to amortize the ~0.35 us per-grid-step cost and
    # keep each x/out DMA in the multi-MiB range; multiple of the packing,
    # never (much) larger than the row count.
    if tm is None:
        target_tile_bytes = 8 << 20
        tm = max(256, min(1024, _round_up(max(1, target_tile_bytes // max(1, D * xb)), pack)))
    tm_eff = max(pack, min(_round_up(tm, pack), _round_up(M, pack)))

    def footprint(tm_, th_, resident):
        wbuf = 1 if resident else 2                 # weight buffering depth
        wt = wbuf * 2 * D * th_ * wb                # W1^T + W2^T blocks
        io = 2 * (2 * tm_ * D * xb)                 # x + out tiles, double buffered
        acc = 0 if resident else tm_ * D * 4        # f32 accumulator scratch
        mid = tm_ * th_ * 4 + tm_ * th_ * wb + tm_ * D * 4  # h(f32) + cast + y(f32)
        return wt + io + acc + mid

    # Hidden-dim tiling decision: keep weights fully resident if they fit,
    # otherwise block H (multiple of 128 so lane/sublane constraints hold and
    # no ragged-H garbage enters the accumulator).
    th = H
    resident = footprint(tm_eff, H, True) <= budget
    if not resident:
        th = next((c for c in (512, 256, 128) if H % c == 0), 0)
        if th == 0 or th == H:
            # TODO(synk): mask ragged H tiles in-kernel for non-128-multiple H.
            th, resident = H, True
    # Shrink the row tile until the chosen configuration fits the budget.
    while footprint(tm_eff, th, resident) > budget and tm_eff > 2 * pack:
        tm_eff = max(pack, _round_up(tm_eff // 2, pack))

    n_m = pl.cdiv(M, tm_eff)
    fp = footprint(tm_eff, th, resident)
    vmem_limit = max(16 << 20, min(int(fp * 1.5) + (8 << 20), vmem_cap - (2 << 20)))

    cost = pl.CostEstimate(
        flops=4 * M * D * H,  # two M x D x H matmuls
        transcendentals=0,
        bytes_accessed=2 * M * D * xb + 2 * D * H * wb * (1 if resident else n_m),
    )

    if resident:
        grid = (n_m,)
        in_specs = [
            pl.BlockSpec((tm_eff, D), lambda i: (i, 0)),                 # x row tile
            # Grid-invariant weights: single-buffer so they don't cost 2x VMEM.
            pl.BlockSpec((D, H), lambda i: (0, 0), pipeline_mode=pl.Buffered(1)),
            pl.BlockSpec((H, D), lambda i: (0, 0), pipeline_mode=pl.Buffered(1)),
        ]
        out_specs = pl.BlockSpec((tm_eff, D), lambda i: (i, 0))
        scratch = ()
        kernel = _ffn_resident_kernel
        dims = ("parallel",)
    else:
        grid = (n_m, H // th)  # reduction axis last
        in_specs = [
            # x / out block indices are constant across k -> fetched/written once per i.
            pl.BlockSpec((tm_eff, D), lambda i, k: (i, 0)),
            pl.BlockSpec((D, th), lambda i, k: (0, k)),
            pl.BlockSpec((th, D), lambda i, k: (k, 0)),
        ]
        out_specs = pl.BlockSpec((tm_eff, D), lambda i, k: (i, 0))
        scratch = (pltpu.VMEM((tm_eff, D), jnp.float32),)
        kernel = _ffn_htiled_kernel
        dims = ("parallel", "arbitrary")

    out = pl.pallas_call(
        kernel,
        out_shape=jax.ShapeDtypeStruct((M, D), x.dtype),
        grid_spec=pltpu.PrefetchScalarGridSpec(
            num_scalar_prefetch=0,
            grid=grid,
            in_specs=in_specs,
            out_specs=out_specs,
            scratch_shapes=scratch,
        ),
        compiler_params=pltpu.CompilerParams(
            dimension_semantics=dims,
            vmem_limit_bytes=vmem_limit,
        ),
        cost_estimate=cost,
    )(x2d, w1t, w2t)

    return out.reshape(orig_shape)


def _reference(x, w1, w2):
    # Pure-JAX reference with the original nn.Linear semantics.
    h = jnp.maximum(jnp.einsum("...d,hd->...h", x, w1), 0.0)
    return jnp.einsum("...h,dh->...d", h, w2)


if __name__ == "__main__":
    key = jax.random.PRNGKey(0)
    batch, seq, vis_dim = 2, 8, 32
    hidden = vis_dim // 4

    kx, k1, k2, kx2 = jax.random.split(key, 4)
    x = jax.random.normal(kx, (batch, seq, vis_dim), dtype=jnp.float32)
    # Deterministic kaiming-uniform-style init, nn.Linear layout (out, in).
    bound1 = 1.0 / (vis_dim ** 0.5)
    bound2 = 1.0 / (hidden ** 0.5)
    w1 = jax.random.uniform(k1, (hidden, vis_dim), jnp.float32, -bound1, bound1)
    w2 = jax.random.uniform(k2, (vis_dim, hidden), jnp.float32, -bound2, bound2)

    # Transpose ONCE at setup time (outside the hot path), not per call.
    w1t = jnp.asarray(w1.T)  # (D, H)
    w2t = jnp.asarray(w2.T)  # (H, D)

    # Main case (exact row tile).
    y = poswise_ffn_2(x, w1t, w2t)
    jax.block_until_ready(y)
    y_ref = _reference(x, w1, w2)
    assert y.shape == x.shape
    assert jnp.allclose(y, y_ref, atol=1e-5, rtol=1e-5)

    # Ragged row count (M = 14, tm = 8): exercises the masked final block path
    # that replaced the host-side pad/slice.
    x_rag = jax.random.normal(kx2, (batch, seq - 1, vis_dim), dtype=jnp.float32)
    y_rag = poswise_ffn_2(x_rag, w1t, w2t, tm=8)
    jax.block_until_ready(y_rag)
    y_rag_ref = _reference(x_rag, w1, w2)
    assert y_rag.shape == x_rag.shape
    assert jnp.allclose(y_rag, y_rag_ref, atol=1e-5, rtol=1e-5)

    print("KERNEL_OK")
</pallas_src>

<mosaic_0001>
module attributes {stable_mosaic.version = 11 : i64} {
  func.func @_ffn_resident_kernel(%arg0: i32, %arg1: memref<16x32xf32, #tpu.memory_space<vmem>>, %arg2: memref<32x8xf32, #tpu.memory_space<vmem>>, %arg3: memref<8x32xf32, #tpu.memory_space<vmem>>, %arg4: memref<16x32xf32, #tpu.memory_space<vmem>>) attributes {dimension_semantics = [#tpu.dimension_semantics<parallel>], iteration_bounds = array<i64: 1>, scalar_prefetch = 0 : i64, scratch_operands = 0 : i64, tpu.core_type = #tpu.core_type<tc>, window_params = [{transform_indices = @transform_0, window_bounds = array<i64: 16, 32>}, {pipeline_mode = #tpu.pipeline_mode<synchronous>, transform_indices = @transform_1, window_bounds = array<i64: 32, 8>}, {pipeline_mode = #tpu.pipeline_mode<synchronous>, transform_indices = @transform_2, window_bounds = array<i64: 8, 32>}, {transform_indices = @transform_3, window_bounds = array<i64: 16, 32>}]} {
    %c0 = arith.constant 0 : index
    %c0_0 = arith.constant 0 : index
    %0 = vector.load %arg1[%c0, %c0_0] : memref<16x32xf32, #tpu.memory_space<vmem>>, vector<16x32xf32>
    %c0_1 = arith.constant 0 : index
    %c0_2 = arith.constant 0 : index
    %1 = vector.load %arg2[%c0_1, %c0_2] : memref<32x8xf32, #tpu.memory_space<vmem>>, vector<32x8xf32>
    %cst = arith.constant dense<0.000000e+00> : vector<16x8xf32>
    %2 = tpu.matmul %0, %1, %cst {dimension_numbers = #tpu.dot_dimension_numbers<[1], [0], [0], [1], [0, 0, 1, 1], [], []>} : vector<16x32xf32>, vector<32x8xf32>, vector<16x8xf32> -> vector<16x8xf32>
    %cst_3 = arith.constant 0.000000e+00 : f32
    %3 = vector.broadcast %cst_3 : f32 to vector<16x8xf32>
    %4 = arith.maximumf %2, %3 : vector<16x8xf32>
    %c0_4 = arith.constant 0 : index
    %c0_5 = arith.constant 0 : index
    %5 = vector.load %arg3[%c0_4, %c0_5] : memref<8x32xf32, #tpu.memory_space<vmem>>, vector<8x32xf32>
    %cst_6 = arith.constant dense<0.000000e+00> : vector<16x32xf32>
    %6 = tpu.matmul %4, %5, %cst_6 {dimension_numbers = #tpu.dot_dimension_numbers<[1], [0], [0], [1], [0, 0, 1, 1], [], []>} : vector<16x8xf32>, vector<8x32xf32>, vector<16x32xf32> -> vector<16x32xf32>
    %c0_7 = arith.constant 0 : index
    %c0_8 = arith.constant 0 : index
    %7 = vector.load %arg4[%c0_7, %c0_8] : memref<16x32xf32, #tpu.memory_space<vmem>>, vector<16x32xf32>
    tpu.vector_store %arg4[%c0_7, %c0_8], %6 {strides = array<i32>} : memref<16x32xf32, #tpu.memory_space<vmem>>, vector<16x32xf32>,
    return
  }
  func.func @transform_0(%arg0: i32) -> (i32, i32) {
    %c0_i32 = arith.constant 0 : i32
    %c0_i32_0 = arith.constant 0 : i32
    return %arg0, %c0_i32 : i32, i32
  }
  func.func @transform_1(%arg0: i32) -> (i32, i32) {
    %c0_i32 = arith.constant 0 : i32
    %c0_i32_0 = arith.constant 0 : i32
    %c0_i32_1 = arith.constant 0 : i32
    return %c0_i32, %c0_i32_0 : i32, i32
  }
  func.func @transform_2(%arg0: i32) -> (i32, i32) {
    %c0_i32 = arith.constant 0 : i32
    %c0_i32_0 = arith.constant 0 : i32
    %c0_i32_1 = arith.constant 0 : i32
    return %c0_i32, %c0_i32_0 : i32, i32
  }
  func.func @transform_3(%arg0: i32) -> (i32, i32) {
    %c0_i32 = arith.constant 0 : i32
    %c0_i32_0 = arith.constant 0 : i32
    return %arg0, %c0_i32 : i32, i32
  }
}

</mosaic_0001>

<llo_original>
// kernel: poswise_ffn_2.1
$region0: #{poswise_ffn_2.1}
  #allocation0 [shape = 'u32[]', space=smem, size = 0x4, offset = 0x4, fixed_abs, tag = 'smem constant byte address 0x4 - core index']
  #allocation1 [shape = 'u32[144,128]{1,0:T(1,128)}', space=vmem, size = 0x12000, scoped, tag = 'internal scratch']
  %s0 = inlined_call_operand.vmem [shape: f32[16,32], index: 0, kind: input, shape index: {}]
  %s1 = inlined_call_operand.vmem [shape: f32[32,8], index: 1, kind: input, shape index: {}]
  %s2 = inlined_call_operand.vmem [shape: f32[8,32], index: 2, kind: input, shape index: {}]
  %s3 = inlined_call_operand.hbm [shape: f32[16,32], index: 3, kind: output, shape index: {}]
  %s4 = sld [smem:[#allocation0]]
  $region22: #{poswise_ffn_2.1} parent=0
    _
  %s6 = ssub.s32 1, %s4
  %s7 = scalar_select 0, %s6, %s4
  $region1: #{poswise_ffn_2.1} parent=0
    #allocation2 [shape = 'u8[8192]{0}', space=vmem, size = 0x2000, scoped, tag = 'output window, operand 0, single buffered']
    #allocation3 [shape = 's32[1]{0}', space=sflag, size = 0x4, scoped, tag = 'scoped memory for poswise_ffn_2.1']
    %8 = vsyncpa [#allocation3], 0
    // Predicated region
    $region2: #{poswise_ffn_2.1} parent=1 // pred_check
      _
    $region3: #{poswise_ffn_2.1} parent=1 // pred_check_branch
      %10 = sbr.rel (0) target = $region5
    $region4: #{poswise_ffn_2.1} parent=1 // pred_region
      _
    $region5: #{poswise_ffn_2.1} parent=1 // pred_fallthru
      _
    // Predicated region
    $region6: #{poswise_ffn_2.1} parent=1 // pred_check
      _
    $region7: #{poswise_ffn_2.1} parent=1 // pred_check_branch
      %12 = sbr.rel (0) target = $region9
    $region8: #{poswise_ffn_2.1} parent=1 // pred_region
      _
    $region9: #{poswise_ffn_2.1} parent=1 // pred_fallthru
      _
    // Predicated region
    $region10: #{poswise_ffn_2.1} parent=1 // pred_check
      _
    $region11: #{poswise_ffn_2.1} parent=1 // pred_check_branch
      %14 = sbr.rel (0) target = $region13
    $region12: #{poswise_ffn_2.1} parent=1 // pred_region
      _
    $region13: #{poswise_ffn_2.1} parent=1 // pred_fallthru
      _
    %v15 = vld [vmem:[%s0] sm:$0xff]
    %v16 = vld [vmem:[%s0 + $0x8] sm:$0xff]
    %v17 = vld [vmem:[%s1] sm:$0xff]
    %v18 = vld [vmem:[%s1 + $0x8] sm:$0xff]
    %v19 = vld [vmem:[%s1 + $0x10] sm:$0xff]
    %v20 = vld [vmem:[%s1 + $0x18] sm:$0xff]
    %vm21 = vcmask 261120
    %v23 = vsel %vm21, %v15, 0
    %v26 = vsel %vm21, %v16, 0
    %28 = vmatprep.subr.mxu0 0.0
    %29 = vmatpush1.msra.mxu0 %v17
    %30 = vmatprep.subr.mxu0 0.0
    %31 = vmatpush1.msra.mxu0 %v18
    %32 = vmatprep.subr.mxu0 0.0
    %33 = vmatpush1.msra.mxu0 %v19
    %34 = vmatprep.subr.mxu0 0.0
    %35 = vmatpush1.msra.mxu0 %v20
    %36 = vmatprep.subr.mxu0 0.0
    %37 = vmatpush1.msra.mxu0 0.0
    %38 = vmatprep.subr.mxu0 0.0
    %39 = vmatpush1.msra.mxu0 0.0
    %40 = vmatprep.subr.mxu0 0.0
    %41 = vmatpush1.msra.mxu0 0.0
    %42 = vmatprep.subr.mxu0 0.0
    %43 = vmatpush1.msra.mxu0 0.0
    %44 = vmatprep.subr.mxu0 0.0
    %45 = vmatpush1.msra.mxu0 0.0
    %46 = vmatprep.subr.mxu0 0.0
    %47 = vmatpush1.msra.mxu0 0.0
    %48 = vmatprep.subr.mxu0 0.0
    %49 = vmatpush1.msra.mxu0 0.0
    %50 = vmatprep.subr.mxu0 0.0
    %51 = vmatpush1.msra.mxu0 0.0
    %52 = vmatprep.subr.mxu0 0.0
    %53 = vmatpush1.msra.mxu0 0.0
    %54 = vmatprep.subr.mxu0 0.0
    %55 = vmatpush1.msra.mxu0 0.0
    %56 = vmatprep.subr.mxu0 0.0
    %57 = vmatpush1.msra.mxu0 0.0
    %58 = vmatprep.subr.mxu0 0.0
    %59 = vmatpush1.msra.mxu0 0.0
    %60 = vmatprep.subr.mxu0 0.0
    %61 = vmatpush1.msra.mxu0 0.0
    %62 = vmatprep.subr.mxu0 0.0
    %63 = vmatpush1.msra.mxu0 0.0
    %64 = vmatprep.subr.mxu0 0.0
    %65 = vmatpush1.msra.mxu0 0.0
    %66 = vmatprep.subr.mxu0 0.0
    %67 = vmatpush1.msra.mxu0 0.0
    %68 = vmatprep.subr.mxu0 0.0
    %69 = vmatpush1.msra.mxu0 0.0
    %70 = vmatprep.subr.mxu0 0.0
    %71 = vmatpush1.msra.mxu0 0.0
    %72 = vmatprep.subr.mxu0 0.0
    %73 = vmatpush1.msra.mxu0 0.0
    %74 = vmatprep.subr.mxu0 0.0
    %75 = vmatpush1.msra.mxu0 0.0
    %76 = vmatprep.subr.mxu0 0.0
    %77 = vmatpush1.msra.mxu0 0.0
    %78 = vmatprep.subr.mxu0 0.0
    %79 = vmatpush1.msra.mxu0 0.0
    %80 = vmatprep.subr.mxu0 0.0
    %81 = vmatpush1.msra.mxu0 0.0
    %82 = vmatprep.subr.mxu0 0.0
    %83 = vmatpush1.msra.mxu0 0.0
    %84 = vmatprep.subr.mxu0 0.0
    %85 = vmatpush1.msra.mxu0 0.0
    %86 = vmatprep.subr.mxu0 0.0
    %87 = vmatpush1.msra.mxu0 0.0
    %88 = vmatprep.subr.mxu0 0.0
    %89 = vmatpush1.msra.mxu0 0.0
    %90 = vmatprep.subr.mxu0 0.0
    %91 = vmatpush1.msra.mxu0 0.0
    %92 = vmatprep.mubr.f32.mxu0 0.0
    %93 = vmatmul.mubr.f32.gmra.mrb[0].mxu0 %v23
    %v94 = vpop.f32.mrb[0].mxu0
    %v95 = vadd.f32 0.0, %v94
    %v96 = vpop.f32.mrb[0].mxu0
    %97 = vmatprep.mubr.f32.mxu0 0.0
    %98 = vmatmul.mubr.f32.gmra.mrb[0].mxu0 %v26
    %v99 = vpop.f32.mrb[0].mxu0
    %v100 = vadd.f32 0.0, %v99
    %v101 = vpop.f32.mrb[0].mxu0
    %102 = vdwg.mxu0
    %v103 = vmax.f32 %v95, 0.0
    %v104 = vmax.f32 %v100, 0.0
    %v105 = vld [vmem:[%s2] sm:$0xff]
    %vm106 = vcmask 64512
    %v108 = vsel %vm106, %v103, 0
    %v111 = vsel %vm106, %v104, 0
    %113 = vmatprep.subr.mxu0 0.0
    %114 = vmatpush1.msra.mxu0 %v105
    %115 = vmatprep.subr.mxu0 0.0
    %116 = vmatpush1.msra.mxu0 0.0
    %117 = vmatprep.subr.mxu0 0.0
    %118 = vmatpush1.msra.mxu0 0.0
    %119 = vmatprep.subr.mxu0 0.0
    %120 = vmatpush1.msra.mxu0 0.0
    %121 = vmatprep.subr.mxu0 0.0
    %122 = vmatpush1.msra.mxu0 0.0
    %123 = vmatprep.subr.mxu0 0.0
    %124 = vmatpush1.msra.mxu0 0.0
    %125 = vmatprep.subr.mxu0 0.0
    %126 = vmatpush1.msra.mxu0 0.0
    %127 = vmatprep.subr.mxu0 0.0
    %128 = vmatpush1.msra.mxu0 0.0
    %129 = vmatprep.subr.mxu0 0.0
    %130 = vmatpush1.msra.mxu0 0.0
    %131 = vmatprep.subr.mxu0 0.0
    %132 = vmatpush1.msra.mxu0 0.0
    %133 = vmatprep.subr.mxu0 0.0
    %134 = vmatpush1.msra.mxu0 0.0
    %135 = vmatprep.subr.mxu0 0.0
    %136 = vmatpush1.msra.mxu0 0.0
    %137 = vmatprep.subr.mxu0 0.0
    %138 = vmatpush1.msra.mxu0 0.0
    %139 = vmatprep.subr.mxu0 0.0
    %140 = vmatpush1.msra.mxu0 0.0
    %141 = vmatprep.subr.mxu0 0.0
    %142 = vmatpush1.msra.mxu0 0.0
    %143 = vmatprep.subr.mxu0 0.0
    %144 = vmatpush1.msra.mxu0 0.0
    %145 = vmatprep.subr.mxu0 0.0
    %146 = vmatpush1.msra.mxu0 0.0
    %147 = vmatprep.subr.mxu0 0.0
    %148 = vmatpush1.msra.mxu0 0.0
    %149 = vmatprep.subr.mxu0 0.0
    %150 = vmatpush1.msra.mxu0 0.0
    %151 = vmatprep.subr.mxu0 0.0
    %152 = vmatpush1.msra.mxu0 0.0
    %153 = vmatprep.subr.mxu0 0.0
    %154 = vmatpush1.msra.mxu0 0.0
    %155 = vmatprep.subr.mxu0 0.0
    %156 = vmatpush1.msra.mxu0 0.0
    %157 = vmatprep.subr.mxu0 0.0
    %158 = vmatpush1.msra.mxu0 0.0
    %159 = vmatprep.subr.mxu0 0.0
    %160 = vmatpush1.msra.mxu0 0.0
    %161 = vmatprep.subr.mxu0 0.0
    %162 = vmatpush1.msra.mxu0 0.0
    %163 = vmatprep.subr.mxu0 0.0
    %164 = vmatpush1.msra.mxu0 0.0
    %165 = vmatprep.subr.mxu0 0.0
    %166 = vmatpush1.msra.mxu0 0.0
    %167 = vmatprep.subr.mxu0 0.0
    %168 = vmatpush1.msra.mxu0 0.0
    %169 = vmatprep.subr.mxu0 0.0
    %170 = vmatpush1.msra.mxu0 0.0
    %171 = vmatprep.subr.mxu0 0.0
    %172 = vmatpush1.msra.mxu0 0.0
    %173 = vmatprep.subr.mxu0 0.0
    %174 = vmatpush1.msra.mxu0 0.0
    %175 = vmatprep.subr.mxu0 0.0
    %176 = vmatpush1.msra.mxu0 0.0
    %177 = vmatprep.mubr.f32.mxu0 0.0
    %178 = vmatmul.mubr.f32.gmra.mrb[0].mxu0 %v108
    %v179 = vpop.f32.mrb[0].mxu0
    %v180 = vadd.f32 0.0, %v179
    %v181 = vpop.f32.mrb[0].mxu0
    %182 = vmatprep.mubr.f32.mxu0 0.0
    %183 = vmatmul.mubr.f32.gmra.mrb[0].mxu0 %v111
    %v184 = vpop.f32.mrb[0].mxu0
    %v185 = vadd.f32 0.0, %v184
    %v186 = vpop.f32.mrb[0].mxu0
    %187 = vdwg.mxu0
    %188 = vst.msk [vmem:[#allocation2] sm:$0xff] %vm21, %v180
    %189 = vst.msk [vmem:[#allocation2 + $0x8] sm:$0xff] %vm21, %v185
    // Predicated region
    $region14: #{poswise_ffn_2.1} parent=1 // pred_check
      _
    $region15: #{poswise_ffn_2.1} parent=1 // pred_check_branch
      %191 = sbr.rel (0) target = $region17
    $region16: #{poswise_ffn_2.1} parent=1 // pred_region
      %s193 = ssub.s32 256, 256
      %194 = vsyncadd [#allocation3], %s193
      %s195 = sshll.u32 [#allocation2], 4
      %s196 = int_to_ptr.vmem [resolvable:$true] %s195
      %201 = dma.vmem_to_hbm [thread:$0]  %s196, 256, %s3, [#allocation3], 128, 128, 8
    $region17: #{poswise_ffn_2.1} parent=1 // pred_fallthru
      _
    // Predicated region
    $region18: #{poswise_ffn_2.1} parent=1 // pred_check
      _
    $region19: #{poswise_ffn_2.1} parent=1 // pred_check_branch
      %203 = sbr.rel (0) target = $region21
    $region20: #{poswise_ffn_2.1} parent=1 // pred_region
      %204 = dma.done [#allocation3], 256
    $region21: #{poswise_ffn_2.1} parent=1 // pred_fallthru
      _
    %205 = vsyncpa [#allocation3], 1

</llo_original>
